<compile_context>
chip_gen: v7x
topology: tpu7x:2x2x1
jax: 0.10.0
libtpu: 0.0.40
codegen_flags: <defaults>
</compile_context>

<pallas_src>
import jax
import jax.numpy as jnp
from jax.experimental import pallas as pl
from jax.experimental.pallas import tpu as pltpu


def _round_up(x, m):
    return ((x + m - 1) // m) * m


def _sublane_multiple(dtype):
    # Sub-32-bit dtypes pack along sublanes: 8 rows for 4B, 16 for 2B, 32 for 1B.
    return {4: 8, 2: 16, 1: 32}.get(jnp.dtype(dtype).itemsize, 8)


def _linear_kernel_direct(x_ref, w_ref, b_ref, o_ref):
    """f32 output: accumulate straight into the resident (i, j) output tile."""
    k = pl.program_id(2)

    @pl.when(k == 0)
    def _seed_bias():
        o_ref[...] = jnp.broadcast_to(b_ref[...], o_ref.shape).astype(o_ref.dtype)

    # Hot loop: pure MXU push + f32 accumulate into the output tile.
    o_ref[...] += jnp.dot(
        x_ref[...], w_ref[...], preferred_element_type=jnp.float32
    )


def _linear_kernel_acc(x_ref, w_ref, b_ref, o_ref, acc_ref):
    """Narrow output dtype: f32 VMEM accumulator + downcast on the last K step."""
    k = pl.program_id(2)

    @pl.when(k == 0)
    def _init():
        acc_ref[...] = jnp.zeros_like(acc_ref)

    acc_ref[...] += jnp.dot(
        x_ref[...], w_ref[...], preferred_element_type=jnp.float32
    )

    @pl.when(k == pl.num_programs(2) - 1)
    def _finalize():
        o_ref[...] = (acc_ref[...] + b_ref[...]).astype(o_ref.dtype)


def linear(x, w, b, *, tm=512, tn=512, tk=1024):
    """x: (N, in_features); w: (in_features, out_features); b: (out_features,)."""
    N, K = x.shape
    K2, M = w.shape
    assert K == K2 and b.shape == (M,)

    out_dtype = x.dtype
    sub = _sublane_multiple(x.dtype)

    # Clamp tiles to the (sublane, 128)-aligned problem extents.
    tm = min(tm, _round_up(N, sub))
    tn = min(tn, _round_up(M, 128))
    tk = min(tk, _round_up(K, 128))

    Np, Kp, Mp = _round_up(N, tm), _round_up(K, tk), _round_up(M, tn)

    # Megacore (v7x has 2 TCs): if both parallel axes collapse to a single tile,
    # split the output-N axis so the grid can shard across cores.
    if Np // tm == 1 and Mp // tn == 1 and Mp % 256 == 0:
        tn = Mp // 2

    grid = (Np // tm, Mp // tn, Kp // tk)

    # Zero-pad only when the problem is not already tile-aligned (zeros are
    # inert for the matmul; padded output columns are sliced off below).
    xp = x if (Np, Kp) == (N, K) else jnp.pad(x, ((0, Np - N), (0, Kp - K)))
    wp = w if (Kp, Mp) == (K, M) else jnp.pad(w, ((0, Kp - K), (0, Mp - M)))
    bp = (b if Mp == M else jnp.pad(b, (0, Mp - M))).reshape(1, Mp)

    itin = jnp.dtype(x.dtype).itemsize
    itout = jnp.dtype(out_dtype).itemsize

    use_direct = out_dtype == jnp.float32
    kernel = _linear_kernel_direct if use_direct else _linear_kernel_acc
    scratch = [] if use_direct else [pltpu.VMEM((tm, tn), jnp.float32)]

    # VMEM budget: double-buffered x / w / bias tiles + double-buffered output
    # tile (+ f32 acc scratch for narrow outputs).  Explicit limit with 2x
    # headroom, capped at 48 MiB so it stays inside v7x's 64 MiB physical VMEM
    # (and above v5e's 16 MiB scoped default).
    need = 2 * (tm * tk + tk * tn + tn) * itin + 2 * tm * tn * itout
    if not use_direct:
        need += tm * tn * 4
    vmem_limit = int(min(max(2 * need, 32 << 20), 48 << 20))

    grid_m, grid_n = grid[0], grid[1]
    cost = pl.CostEstimate(
        flops=2 * Np * Kp * Mp,
        transcendentals=0,
        # x is re-streamed once per N-output tile, w once per M-tile.
        bytes_accessed=(Np * Kp * itin) * grid_n
        + (Kp * Mp * itin) * grid_m
        + Np * Mp * itout
        + Mp * itin * grid_m,
    )

    out = pl.pallas_call(
        kernel,
        out_shape=jax.ShapeDtypeStruct((Np, Mp), out_dtype),
        grid_spec=pltpu.PrefetchScalarGridSpec(
            num_scalar_prefetch=0,
            grid=grid,
            in_specs=[
                pl.BlockSpec((tm, tk), lambda i, j, k: (i, k)),   # x tile
                pl.BlockSpec((tk, tn), lambda i, j, k: (k, j)),   # w tile
                pl.BlockSpec((1, tn), lambda i, j, k: (0, j)),    # bias tile
            ],
            out_specs=pl.BlockSpec((tm, tn), lambda i, j, k: (i, j)),
            scratch_shapes=scratch,
        ),
        compiler_params=pltpu.CompilerParams(
            # M/N tiles are independent -> megacore-shardable; K is a reduction.
            dimension_semantics=("parallel", "parallel", "arbitrary"),
            vmem_limit_bytes=vmem_limit,
        ),
        cost_estimate=cost,
    )(xp, wp, bp)

    if (Np, Mp) != (N, M):
        out = out[:N, :M]
    return out


if __name__ == "__main__":
    key = jax.random.PRNGKey(0)
    k_x, k_w, k_b = jax.random.split(key, 3)

    # Small shapes consistent with the module's forward (x.mm(w) + b).
    N, in_features, out_features = 8, 32, 16
    x = jax.random.normal(k_x, (N, in_features), dtype=jnp.float32)
    w = jax.random.normal(k_w, (in_features, out_features), dtype=jnp.float32)
    b = jax.random.normal(k_b, (out_features,), dtype=jnp.float32)

    out = linear(x, w, b)
    jax.block_until_ready(out)
    assert out.shape == (N, out_features) and out.dtype == x.dtype
    ref = x @ w + b
    assert jnp.allclose(out, ref, atol=1e-5, rtol=1e-5)

    # Multi-tile grid at the new 512/512/1024 tiles: K-accumulation path with
    # no pad/slice emitted (shapes divide the tiles exactly), grid (1, 2, 2).
    k_x2, k_w2, k_b2 = jax.random.split(jax.random.PRNGKey(1), 3)
    N2, K2, M2 = 512, 2048, 1024
    x2 = jax.random.normal(k_x2, (N2, K2), dtype=jnp.float32)
    w2 = jax.random.normal(k_w2, (K2, M2), dtype=jnp.float32)
    b2 = jax.random.normal(k_b2, (M2,), dtype=jnp.float32)
    out2 = linear(x2, w2, b2)
    jax.block_until_ready(out2)
    ref2 = x2 @ w2 + b2
    assert jnp.allclose(out2, ref2, atol=2e-2, rtol=2e-3)

    # Skinny-batch case: megacore split yields two output-N tiles (grid (1,2,1)).
    k_x3, k_w3, k_b3 = jax.random.split(jax.random.PRNGKey(2), 3)
    N3, K3, M3 = 8, 256, 512
    x3 = jax.random.normal(k_x3, (N3, K3), dtype=jnp.float32)
    w3 = jax.random.normal(k_w3, (K3, M3), dtype=jnp.float32)
    b3 = jax.random.normal(k_b3, (M3,), dtype=jnp.float32)
    out3 = linear(x3, w3, b3)
    jax.block_until_ready(out3)
    ref3 = x3 @ w3 + b3
    assert jnp.allclose(out3, ref3, atol=1e-3, rtol=1e-3)

    # bf16 inputs: MXU-native bf16 matmul, f32 accumulation, bf16 output via
    # the scratch-accumulator kernel (16-aligned sublane clamp).
    k_x4, k_w4, k_b4 = jax.random.split(jax.random.PRNGKey(3), 3)
    N4, K4, M4 = 256, 512, 256
    x4 = jax.random.normal(k_x4, (N4, K4), dtype=jnp.float32).astype(jnp.bfloat16)
    w4 = jax.random.normal(k_w4, (K4, M4), dtype=jnp.float32).astype(jnp.bfloat16)
    b4 = jax.random.normal(k_b4, (M4,), dtype=jnp.float32).astype(jnp.bfloat16)
    out4 = linear(x4, w4, b4)
    jax.block_until_ready(out4)
    assert out4.dtype == jnp.bfloat16
    ref4 = x4.astype(jnp.float32) @ w4.astype(jnp.float32) + b4.astype(jnp.float32)
    assert jnp.allclose(out4.astype(jnp.float32), ref4, atol=0.25, rtol=2e-2)

    print("KERNEL_OK")
</pallas_src>

<mosaic_0001>
module attributes {stable_mosaic.version = 11 : i64} {
  func.func @_linear_kernel_direct(%arg0: i32, %arg1: i32, %arg2: i32, %arg3: memref<8x128xf32, #tpu.memory_space<vmem>>, %arg4: memref<128x128xf32, #tpu.memory_space<vmem>>, %arg5: memref<1x128xf32, #tpu.memory_space<vmem>>, %arg6: memref<8x128xf32, #tpu.memory_space<vmem>>) attributes {dimension_semantics = [#tpu.dimension_semantics<parallel>, #tpu.dimension_semantics<parallel>, #tpu.dimension_semantics<arbitrary>], iteration_bounds = array<i64: 1, 1, 1>, scalar_prefetch = 0 : i64, scratch_operands = 0 : i64, tpu.core_type = #tpu.core_type<tc>, window_params = [{transform_indices = @transform_0, window_bounds = array<i64: 8, 128>}, {transform_indices = @transform_1, window_bounds = array<i64: 128, 128>}, {transform_indices = @transform_2, window_bounds = array<i64: 1, 128>}, {transform_indices = @transform_3, window_bounds = array<i64: 8, 128>}]} {
    %c0_i32 = arith.constant 0 : i32
    %0 = arith.cmpi eq, %arg2, %c0_i32 : i32
    %1 = arith.extui %0 : i1 to i32
    %c0_i32_0 = arith.constant 0 : i32
    %2 = arith.cmpi ne, %1, %c0_i32_0 : i32
    scf.if %2 {
      %c0_8 = arith.constant 0 : index
      %c0_9 = arith.constant 0 : index
      %9 = vector.load %arg5[%c0_8, %c0_9] : memref<1x128xf32, #tpu.memory_space<vmem>>, vector<1x128xf32>
      %10 = vector.shape_cast %9 : vector<1x128xf32> to vector<1x128xf32>
      %11 = vector.broadcast %10 : vector<1x128xf32> to vector<8x128xf32>
      %c0_10 = arith.constant 0 : index
      %c0_11 = arith.constant 0 : index
      %12 = vector.load %arg6[%c0_10, %c0_11] : memref<8x128xf32, #tpu.memory_space<vmem>>, vector<8x128xf32>
      tpu.vector_store %arg6[%c0_10, %c0_11], %11 {strides = array<i32>} : memref<8x128xf32, #tpu.memory_space<vmem>>, vector<8x128xf32>,
    } else {
    }
    %c0 = arith.constant 0 : index
    %c0_1 = arith.constant 0 : index
    %3 = vector.load %arg6[%c0, %c0_1] : memref<8x128xf32, #tpu.memory_space<vmem>>, vector<8x128xf32>
    %c0_2 = arith.constant 0 : index
    %c0_3 = arith.constant 0 : index
    %4 = vector.load %arg3[%c0_2, %c0_3] : memref<8x128xf32, #tpu.memory_space<vmem>>, vector<8x128xf32>
    %c0_4 = arith.constant 0 : index
    %c0_5 = arith.constant 0 : index
    %5 = vector.load %arg4[%c0_4, %c0_5] : memref<128x128xf32, #tpu.memory_space<vmem>>, vector<128x128xf32>
    %cst = arith.constant dense<0.000000e+00> : vector<8x128xf32>
    %6 = tpu.matmul %4, %5, %cst {dimension_numbers = #tpu.dot_dimension_numbers<[1], [0], [0], [1], [0, 0, 1, 1], [], []>} : vector<8x128xf32>, vector<128x128xf32>, vector<8x128xf32> -> vector<8x128xf32>
    %7 = arith.addf %3, %6 : vector<8x128xf32>
    %c0_6 = arith.constant 0 : index
    %c0_7 = arith.constant 0 : index
    %8 = vector.load %arg6[%c0_6, %c0_7] : memref<8x128xf32, #tpu.memory_space<vmem>>, vector<8x128xf32>
    tpu.vector_store %arg6[%c0_6, %c0_7], %7 {strides = array<i32>} : memref<8x128xf32, #tpu.memory_space<vmem>>, vector<8x128xf32>,
    return
  }
  func.func @transform_0(%arg0: i32, %arg1: i32, %arg2: i32) -> (i32, i32) {
    %c0_i32 = arith.constant 0 : i32
    return %arg0, %arg2 : i32, i32
  }
  func.func @transform_1(%arg0: i32, %arg1: i32, %arg2: i32) -> (i32, i32) {
    %c0_i32 = arith.constant 0 : i32
    return %arg2, %arg1 : i32, i32
  }
  func.func @transform_2(%arg0: i32, %arg1: i32, %arg2: i32) -> (i32, i32) {
    %c0_i32 = arith.constant 0 : i32
    %c0_i32_0 = arith.constant 0 : i32
    return %c0_i32, %arg1 : i32, i32
  }
  func.func @transform_3(%arg0: i32, %arg1: i32, %arg2: i32) -> (i32, i32) {
    %c0_i32 = arith.constant 0 : i32
    return %arg0, %arg1 : i32, i32
  }
}

</mosaic_0001>

<llo_original>
// kernel: tpu_custom_call.1
$region0: #{tpu_custom_call.1}
  #allocation0 [shape = 'u32[]', space=smem, size = 0x4, offset = 0x4, fixed_abs, tag = 'smem constant byte address 0x4 - core index']
  #allocation1 [shape = 'u32[144,128]{1,0:T(1,128)}', space=vmem, size = 0x12000, scoped, tag = 'internal scratch']
  %s0 = inlined_call_operand.hbm [shape: f32[8,128], index: 0, kind: input, shape index: {}]
  %s1 = inlined_call_operand.hbm [shape: f32[128,128], index: 1, kind: input, shape index: {}]
  %s2 = inlined_call_operand.vmem [shape: f32[1,128], index: 2, kind: input, shape index: {}]
  %s3 = inlined_call_operand.hbm [shape: f32[8,128], index: 3, kind: output, shape index: {}]
  %s4 = sld [smem:[#allocation0]]
  $region34: #{tpu_custom_call.1} parent=0
    _
  %s6 = ssub.s32 1, %s4
  %s7 = scalar_select 0, %s6, %s4
  $region1: #{tpu_custom_call.1} parent=0
    #allocation2 [shape = 'u8[4096]{0}', space=vmem, size = 0x1000, scoped, tag = 'input window, operand 0, single buffered']
    #allocation3 [shape = 's32[1]{0}', space=sflag, size = 0x4, scoped, tag = 'scoped memory for tpu_custom_call.1']
    #allocation4 [shape = 's32[1]{0}', space=sflag, size = 0x4, scoped, tag = 'scoped memory for tpu_custom_call.1']
    #allocation5 [shape = 'u8[65536]{0}', space=vmem, size = 0x10000, scoped, tag = 'input window, operand 1, single buffered']
    #allocation6 [shape = 's32[1]{0}', space=sflag, size = 0x4, scoped, tag = 'scoped memory for tpu_custom_call.1']
    #allocation7 [shape = 'u8[4096]{0}', space=vmem, size = 0x1000, scoped, tag = 'output window, operand 0, single buffered']
    %8 = vsyncpa [#allocation3], 0
    %9 = vsyncpa [#allocation6], 0
    %10 = vsyncpa [#allocation4], 0
    // Predicated region
    $region2: #{tpu_custom_call.1} parent=1 // pred_check
      _
    $region3: #{tpu_custom_call.1} parent=1 // pred_check_branch
      %12 = sbr.rel (0) target = $region5
    $region4: #{tpu_custom_call.1} parent=1 // pred_region
      %s14 = ssub.s32 128, 128
      %15 = vsyncadd [#allocation3], %s14
      %s17 = sshll.u32 [#allocation2], 4
      %s18 = int_to_ptr.vmem [resolvable:$true] %s17
      %20 = dma.hbm_to_vmem [thread:$0]  %s0, 128, %s18, [#allocation3]
    $region5: #{tpu_custom_call.1} parent=1 // pred_fallthru
      _
    // Predicated region
    $region6: #{tpu_custom_call.1} parent=1 // pred_check
      _
    $region7: #{tpu_custom_call.1} parent=1 // pred_check_branch
      %22 = sbr.rel (0) target = $region9
    $region8: #{tpu_custom_call.1} parent=1 // pred_region
      %s24 = ssub.s32 2048, 2048
      %25 = vsyncadd [#allocation6], %s24
      %s26 = sshll.u32 [#allocation5], 4
      %s27 = int_to_ptr.vmem [resolvable:$true] %s26
      %32 = dma.hbm_to_vmem [thread:$0]  %s1, 2048, %s27, [#allocation6], 128, 128, 8
    $region9: #{tpu_custom_call.1} parent=1 // pred_fallthru
      _
    // Predicated region
    $region10: #{tpu_custom_call.1} parent=1 // pred_check
      _
    $region11: #{tpu_custom_call.1} parent=1 // pred_check_branch
      %34 = sbr.rel (0) target = $region13
    $region12: #{tpu_custom_call.1} parent=1 // pred_region
      _
    $region13: #{tpu_custom_call.1} parent=1 // pred_fallthru
      _
    // Predicated region
    $region14: #{tpu_custom_call.1} parent=1 // pred_check
      _
    $region15: #{tpu_custom_call.1} parent=1 // pred_check_branch
      %36 = sbr.rel (0) target = $region17
    $region16: #{tpu_custom_call.1} parent=1 // pred_region
      %37 = dma.done [#allocation3], 128
    $region17: #{tpu_custom_call.1} parent=1 // pred_fallthru
      _
    // Predicated region
    $region18: #{tpu_custom_call.1} parent=1 // pred_check
      _
    $region19: #{tpu_custom_call.1} parent=1 // pred_check_branch
      %39 = sbr.rel (0) target = $region21
    $region20: #{tpu_custom_call.1} parent=1 // pred_region
      %40 = dma.done [#allocation6], 2048
    $region21: #{tpu_custom_call.1} parent=1 // pred_fallthru
      _
    %p41 = scmp.eq.s32.totalorder 0, 0
    // Predicated region
    $region22: #{tpu_custom_call.1} parent=1 // pred_check
      %p42 = pneg %p41
    $region23: #{tpu_custom_call.1} parent=1 // pred_check_branch
      %44 = sbr.rel (%p42) target = $region25
    $region24: #{tpu_custom_call.1} parent=1 // pred_region
      %v45 = vld [vmem:[%s2] sm:$0x1]
      %v47 = vlaneseq
      %v48 = vshrl.u32 %v47, 7
      %v49 = vsub.s32 0, %v48
      %v50 = vrot.slane %v45, %v49
      %52 = vst [vmem:[#allocation7] sm:$0xff] %v50
    $region25: #{tpu_custom_call.1} parent=1 // pred_fallthru
      _
    %v53 = vld [vmem:[#allocation7] sm:$0xff]
    %v54 = vld [vmem:[#allocation2] sm:$0xff]
    %v55 = vld [vmem:[#allocation5] sm:$0xff]
    %v56 = vld [vmem:[#allocation5 + $0x8] sm:$0xff]
    %v57 = vld [vmem:[#allocation5 + $0x10] sm:$0xff]
    %v58 = vld [vmem:[#allocation5 + $0x18] sm:$0xff]
    %v59 = vld [vmem:[#allocation5 + $0x20] sm:$0xff]
    %v60 = vld [vmem:[#allocation5 + $0x28] sm:$0xff]
    %v61 = vld [vmem:[#allocation5 + $0x30] sm:$0xff]
    %v62 = vld [vmem:[#allocation5 + $0x38] sm:$0xff]
    %v63 = vld [vmem:[#allocation5 + $0x40] sm:$0xff]
    %v64 = vld [vmem:[#allocation5 + $0x48] sm:$0xff]
    %v65 = vld [vmem:[#allocation5 + $0x50] sm:$0xff]
    %v66 = vld [vmem:[#allocation5 + $0x58] sm:$0xff]
    %v67 = vld [vmem:[#allocation5 + $0x60] sm:$0xff]
    %v68 = vld [vmem:[#allocation5 + $0x68] sm:$0xff]
    %v69 = vld [vmem:[#allocation5 + $0x70] sm:$0xff]
    %v70 = vld [vmem:[#allocation5 + $0x78] sm:$0xff]
    %71 = vmatprep.subr.mxu0 0.0
    %72 = vmatpush1.msra.mxu0 %v55
    %73 = vmatprep.subr.mxu0 0.0
    %74 = vmatpush1.msra.mxu0 %v56
    %75 = vmatprep.subr.mxu0 0.0
    %76 = vmatpush1.msra.mxu0 %v57
    %77 = vmatprep.subr.mxu0 0.0
    %78 = vmatpush1.msra.mxu0 %v58
    %79 = vmatprep.subr.mxu0 0.0
    %80 = vmatpush1.msra.mxu0 %v59
    %81 = vmatprep.subr.mxu0 0.0
    %82 = vmatpush1.msra.mxu0 %v60
    %83 = vmatprep.subr.mxu0 0.0
    %84 = vmatpush1.msra.mxu0 %v61
    %85 = vmatprep.subr.mxu0 0.0
    %86 = vmatpush1.msra.mxu0 %v62
    %87 = vmatprep.subr.mxu0 0.0
    %88 = vmatpush1.msra.mxu0 %v63
    %89 = vmatprep.subr.mxu0 0.0
    %90 = vmatpush1.msra.mxu0 %v64
    %91 = vmatprep.subr.mxu0 0.0
    %92 = vmatpush1.msra.mxu0 %v65
    %93 = vmatprep.subr.mxu0 0.0
    %94 = vmatpush1.msra.mxu0 %v66
    %95 = vmatprep.subr.mxu0 0.0
    %96 = vmatpush1.msra.mxu0 %v67
    %97 = vmatprep.subr.mxu0 0.0
    %98 = vmatpush1.msra.mxu0 %v68
    %99 = vmatprep.subr.mxu0 0.0
    %100 = vmatpush1.msra.mxu0 %v69
    %101 = vmatprep.subr.mxu0 0.0
    %102 = vmatpush1.msra.mxu0 %v70
    %103 = vmatprep.subr.mxu0 0.0
    %104 = vmatpush1.msra.mxu0 0.0
    %105 = vmatprep.subr.mxu0 0.0
    %106 = vmatpush1.msra.mxu0 0.0
    %107 = vmatprep.subr.mxu0 0.0
    %108 = vmatpush1.msra.mxu0 0.0
    %109 = vmatprep.subr.mxu0 0.0
    %110 = vmatpush1.msra.mxu0 0.0
    %111 = vmatprep.subr.mxu0 0.0
    %112 = vmatpush1.msra.mxu0 0.0
    %113 = vmatprep.subr.mxu0 0.0
    %114 = vmatpush1.msra.mxu0 0.0
    %115 = vmatprep.subr.mxu0 0.0
    %116 = vmatpush1.msra.mxu0 0.0
    %117 = vmatprep.subr.mxu0 0.0
    %118 = vmatpush1.msra.mxu0 0.0
    %119 = vmatprep.subr.mxu0 0.0
    %120 = vmatpush1.msra.mxu0 0.0
    %121 = vmatprep.subr.mxu0 0.0
    %122 = vmatpush1.msra.mxu0 0.0
    %123 = vmatprep.subr.mxu0 0.0
    %124 = vmatpush1.msra.mxu0 0.0
    %125 = vmatprep.subr.mxu0 0.0
    %126 = vmatpush1.msra.mxu0 0.0
    %127 = vmatprep.subr.mxu0 0.0
    %128 = vmatpush1.msra.mxu0 0.0
    %129 = vmatprep.subr.mxu0 0.0
    %130 = vmatpush1.msra.mxu0 0.0
    %131 = vmatprep.subr.mxu0 0.0
    %132 = vmatpush1.msra.mxu0 0.0
    %133 = vmatprep.subr.mxu0 0.0
    %134 = vmatpush1.msra.mxu0 0.0
    %135 = vmatprep.mubr.f32.mxu0 0.0
    %136 = vmatmul.mubr.f32.gmra.mrb[0].mxu0 %v54
    %v137 = vpop.f32.mrb[0].mxu0
    %v138 = vadd.f32 0.0, %v137
    %v139 = vpop.f32.mrb[0].mxu0
    %140 = vdwg.mxu0
    %v141 = vadd.f32 %v53, %v138
    %142 = vst [vmem:[#allocation7] sm:$0xff] %v141
    // Predicated region
    $region26: #{tpu_custom_call.1} parent=1 // pred_check
      _
    $region27: #{tpu_custom_call.1} parent=1 // pred_check_branch
      %144 = sbr.rel (0) target = $region29
    $region28: #{tpu_custom_call.1} parent=1 // pred_region
      %s146 = ssub.s32 128, 128
      %147 = vsyncadd [#allocation4], %s146
      %s149 = sshll.u32 [#allocation7], 4
      %s150 = int_to_ptr.vmem [resolvable:$true] %s149
      %152 = dma.vmem_to_hbm [thread:$0]  %s150, 128, %s3, [#allocation4]
    $region29: #{tpu_custom_call.1} parent=1 // pred_fallthru
      _
    // Predicated region
    $region30: #{tpu_custom_call.1} parent=1 // pred_check
      _
    $region31: #{tpu_custom_call.1} parent=1 // pred_check_branch
      %154 = sbr.rel (0) target = $region33
    $region32: #{tpu_custom_call.1} parent=1 // pred_region
      %155 = dma.done [#allocation4], 128
    $region33: #{tpu_custom_call.1} parent=1 // pred_fallthru
      _
    %156 = vsyncpa [#allocation3], 1
    %157 = vsyncpa [#allocation6], 1
    %158 = vsyncpa [#allocation4], 1

</llo_original>
